<compile_context>
chip_gen: v7x
topology: tpu7x:2x2x1
jax: 0.10.0
libtpu: 0.0.40
codegen_flags: <defaults>
</compile_context>

<pallas_src>
import jax
import jax.numpy as jnp
from jax.experimental import pallas as pl
from jax.experimental.pallas import tpu as pltpu

# ---------------- model sizes (small, consistent with the module) ----------------
B = 16                 # batch (multiple of B_TILE)
B_TILE = 8             # batch rows per grid step
OBS_DIM = 16           # raw observation dim (input to the synthetic obs_net)
O_DIM = 32             # obs_net.o_dim
HID = O_DIM // 2       # hidden_dim = o_dim // 2 = 16
H2 = 2 * HID           # per-branch hidden width = 32
STATE_DIM = 8
N_ACTIONS = 6
LN_EPS = 1e-5
LANES = 128

# ---------------- packed-slab layout (all offsets sublane-aligned) ----------------
# Weight slab rows: each matrix occupies [row_off, row_off+fan_in) x lanes [0, width)
R_ENC = 0                       # enc_w   (OBS_DIM, O_DIM)           lanes 0:32
R_B1O = R_ENC + OBS_DIM         # ow1     (O_DIM, H2) -> lanes 0:32  (of a 64-wide block)
R_B1G = R_B1O + O_DIM           # gw1     (O_DIM, H2) -> lanes 32:64
R_B2 = R_B1G + O_DIM            # blockdiag(ow2, gw2) (2*H2, 2*HID)
R_F1A = R_B2 + 2 * H2           # fw1[:2*HID]   (2*HID, HID)
R_F1S = R_F1A + 2 * HID         # fw1[2*HID:]   (STATE_DIM, HID)
R_F2 = R_F1S + STATE_DIM        # fw2           (HID, N_ACTIONS) lanes 0:6, rest zero
W_ROWS = R_F2 + HID             # = 200 (multiple of 8)

# Vector slab rows (bias / gamma / beta), one per row, lane-prefix valid, rest zero
V_ENC_B, V_B1, V_G1, V_BETA1, V_B2, V_FB1, V_FG, V_FBETA, V_FB2 = range(9)
V_ROWS = 16


def goal_actor_kernel(obs_ref, goal_ref, state_ref, w_ref, v_ref, out_ref):
    f32 = jnp.float32
    relu = lambda x: jnp.maximum(x, 0.0)
    w = lambda r0, r1, c: w_ref[r0:r1, :c]      # static weight-slab slice
    vrow = lambda r, c: v_ref[r:r + 1, :c]      # (1, c) bias / gamma / beta row

    # ----- obs_net (synthetic encoder): Linear(OBS_DIM, O_DIM) + ReLU -----
    obs_out = relu(
        jnp.dot(obs_ref[...], w(R_ENC, R_ENC + OBS_DIM, O_DIM),
                preferred_element_type=f32) + vrow(V_ENC_B, O_DIM))

    # ----- fused obs_munet / goal_munet, layer 1 (split-matmul, no concat) -----
    # h lanes [0:32) = obs branch pre-LN, lanes [32:64) = goal branch pre-LN.
    h = (jnp.dot(obs_out, w(R_B1O, R_B1O + O_DIM, 2 * H2),
                 preferred_element_type=f32)
         + jnp.dot(goal_ref[...], w(R_B1G, R_B1G + O_DIM, 2 * H2),
                   preferred_element_type=f32)
         + vrow(V_B1, 2 * H2))

    # Segmented LayerNorm: independent stats per 32-lane half (biased var, eps=1e-5).
    lane = jax.lax.broadcasted_iota(jnp.int32, h.shape, 1)
    hi = lane >= H2
    inv_n = 1.0 / H2
    mean_lo = jnp.sum(jnp.where(hi, 0.0, h), axis=-1, keepdims=True) * inv_n
    mean_hi = jnp.sum(jnp.where(hi, h, 0.0), axis=-1, keepdims=True) * inv_n
    d = h - jnp.where(hi, mean_hi, mean_lo)
    dsq = d * d
    var_lo = jnp.sum(jnp.where(hi, 0.0, dsq), axis=-1, keepdims=True) * inv_n
    var_hi = jnp.sum(jnp.where(hi, dsq, 0.0), axis=-1, keepdims=True) * inv_n
    hn = d * jax.lax.rsqrt(jnp.where(hi, var_hi, var_lo) + LN_EPS)
    h = relu(hn * vrow(V_G1, 2 * H2) + vrow(V_BETA1, 2 * H2))
    # Dropout(0.1): identity in eval mode.

    # ----- fused layer 2: block-diag(ow2, gw2); output is already [obss | goals] -----
    obgo = relu(jnp.dot(h, w(R_B2, R_B2 + 2 * H2, 2 * HID),
                        preferred_element_type=f32) + vrow(V_B2, 2 * HID))

    # ----- final_net: split-matmul replaces concat((obss, goals, state)) -----
    fh = (jnp.dot(obgo, w(R_F1A, R_F1A + 2 * HID, HID),
                  preferred_element_type=f32)
          + jnp.dot(state_ref[...], w(R_F1S, R_F1S + STATE_DIM, HID),
                    preferred_element_type=f32)
          + vrow(V_FB1, HID))
    m = jnp.mean(fh, axis=-1, keepdims=True)
    var = jnp.mean(jnp.square(fh - m), axis=-1, keepdims=True)
    fh = relu((fh - m) * jax.lax.rsqrt(var + LN_EPS)
              * vrow(V_FG, HID) + vrow(V_FBETA, HID))

    # Lane-dense logits: valid data in lanes [0, N_ACTIONS), zeros elsewhere.
    out_ref[...] = (jnp.dot(fh, w_ref[R_F2:R_F2 + HID, :],
                            preferred_element_type=f32)
                    + v_ref[V_FB2:V_FB2 + 1, :]).astype(out_ref.dtype)


# ---------------- parameter init (shapes match the module's __init__) ----------------
def init_params(key):
    def lin(k, fan_in, fan_out):
        k1, k2 = jax.random.split(k)
        bound = 1.0 / jnp.sqrt(fan_in)
        wgt = jax.random.uniform(k1, (fan_in, fan_out), jnp.float32, -bound, bound)
        bia = jax.random.uniform(k2, (1, fan_out), jnp.float32, -bound, bound)
        return wgt, bia

    ks = jax.random.split(key, 7)
    p = {}
    # synthetic obs_net
    p["enc_w"], p["enc_b"] = lin(ks[0], OBS_DIM, O_DIM)
    # obs_munet
    p["ow1"], p["ob1"] = lin(ks[1], O_DIM, H2)
    p["og"] = jnp.ones((1, H2), jnp.float32)
    p["obeta"] = jnp.zeros((1, H2), jnp.float32)
    p["ow2"], p["ob2"] = lin(ks[2], H2, HID)
    # goal_munet
    p["gw1"], p["gb1"] = lin(ks[3], O_DIM, H2)
    p["gg"] = jnp.ones((1, H2), jnp.float32)
    p["gbeta"] = jnp.zeros((1, H2), jnp.float32)
    p["gw2"], p["gb2"] = lin(ks[4], H2, HID)
    # final_net
    p["fw1"], p["fb1"] = lin(ks[5], HID + HID + STATE_DIM, HID)
    p["fg"] = jnp.ones((1, HID), jnp.float32)
    p["fbeta"] = jnp.zeros((1, HID), jnp.float32)
    p["fw2"], p["fb2"] = lin(ks[6], HID, N_ACTIONS)
    return p


def pack_params(p):
    """One-time host-side packing of all params into two lane-128 slabs."""
    w = jnp.zeros((W_ROWS, LANES), jnp.float32)
    w = w.at[R_ENC:R_ENC + OBS_DIM, :O_DIM].set(p["enc_w"])
    w = w.at[R_B1O:R_B1O + O_DIM, :H2].set(p["ow1"])
    w = w.at[R_B1G:R_B1G + O_DIM, H2:2 * H2].set(p["gw1"])
    w = w.at[R_B2:R_B2 + H2, :HID].set(p["ow2"])
    w = w.at[R_B2 + H2:R_B2 + 2 * H2, HID:2 * HID].set(p["gw2"])
    w = w.at[R_F1A:R_F1A + 2 * HID, :HID].set(p["fw1"][:2 * HID])
    w = w.at[R_F1S:R_F1S + STATE_DIM, :HID].set(p["fw1"][2 * HID:])
    w = w.at[R_F2:R_F2 + HID, :N_ACTIONS].set(p["fw2"])

    v = jnp.zeros((V_ROWS, LANES), jnp.float32)
    v = v.at[V_ENC_B, :O_DIM].set(p["enc_b"][0])
    v = v.at[V_B1, :H2].set(p["ob1"][0])
    v = v.at[V_B1, H2:2 * H2].set(p["gb1"][0])
    v = v.at[V_G1, :H2].set(p["og"][0])
    v = v.at[V_G1, H2:2 * H2].set(p["gg"][0])
    v = v.at[V_BETA1, :H2].set(p["obeta"][0])
    v = v.at[V_BETA1, H2:2 * H2].set(p["gbeta"][0])
    v = v.at[V_B2, :HID].set(p["ob2"][0])
    v = v.at[V_B2, HID:2 * HID].set(p["gb2"][0])
    v = v.at[V_FB1, :HID].set(p["fb1"][0])
    v = v.at[V_FG, :HID].set(p["fg"][0])
    v = v.at[V_FBETA, :HID].set(p["fbeta"][0])
    v = v.at[V_FB2, :N_ACTIONS].set(p["fb2"][0])
    return w, v


def goal_actor_forward(batch_obs, latent_goal, packed, state=None):
    """Returns (logits, state), mirroring GoalActor.forward."""
    bsz = batch_obs.shape[0]
    if state is None:
        state = jnp.zeros((bsz, STATE_DIM), jnp.float32)
    assert bsz % B_TILE == 0, "batch must be a multiple of B_TILE"
    w_slab, v_slab = packed

    out128 = pl.pallas_call(
        goal_actor_kernel,
        out_shape=jax.ShapeDtypeStruct((bsz, LANES), jnp.float32),
        grid_spec=pltpu.PrefetchScalarGridSpec(
            num_scalar_prefetch=0,
            grid=(bsz // B_TILE,),
            in_specs=[
                pl.BlockSpec((B_TILE, OBS_DIM), lambda i: (i, 0)),
                pl.BlockSpec((B_TILE, O_DIM), lambda i: (i, 0)),
                pl.BlockSpec((B_TILE, STATE_DIM), lambda i: (i, 0)),
                # parameter slabs: constant block -> DMA'd once, VMEM-resident
                pl.BlockSpec((W_ROWS, LANES), lambda i: (0, 0)),
                pl.BlockSpec((V_ROWS, LANES), lambda i: (0, 0)),
            ],
            out_specs=pl.BlockSpec((B_TILE, LANES), lambda i: (i, 0)),
        ),
        compiler_params=pltpu.CompilerParams(
            dimension_semantics=("parallel",)),  # shards batch tiles on v7x's 2 TCs
    )(batch_obs, latent_goal, state, w_slab, v_slab)
    return out128[:, :N_ACTIONS], state


def _reference_forward(batch_obs, latent_goal, p, state):
    """Pure-JAX reference (unfused, unpacked) for validation."""
    def ln(x, g, b):
        m = jnp.mean(x, -1, keepdims=True)
        v = jnp.mean((x - m) ** 2, -1, keepdims=True)
        return (x - m) / jnp.sqrt(v + LN_EPS) * g + b

    relu = lambda x: jnp.maximum(x, 0.0)
    obs_out = relu(batch_obs @ p["enc_w"] + p["enc_b"])
    h = relu(ln(obs_out @ p["ow1"] + p["ob1"], p["og"], p["obeta"]))
    obss = relu(h @ p["ow2"] + p["ob2"])
    g = relu(ln(latent_goal @ p["gw1"] + p["gb1"], p["gg"], p["gbeta"]))
    goals = relu(g @ p["gw2"] + p["gb2"])
    cat = jnp.concatenate([obss, goals, state], axis=1)
    fh = relu(ln(cat @ p["fw1"] + p["fb1"], p["fg"], p["fbeta"]))
    return fh @ p["fw2"] + p["fb2"]


if __name__ == "__main__":
    key = jax.random.PRNGKey(0)
    k_obs, k_goal, k_params = jax.random.split(key, 3)

    batch_obs = jax.random.normal(k_obs, (B, OBS_DIM), jnp.float32)
    latent_goal = jax.random.normal(k_goal, (B, O_DIM), jnp.float32)
    params = init_params(k_params)
    packed = pack_params(params)          # one-time packing

    logits, state = goal_actor_forward(batch_obs, latent_goal, packed)
    logits = jax.block_until_ready(logits)

    ref = _reference_forward(batch_obs, latent_goal, params,
                             jnp.zeros((B, STATE_DIM), jnp.float32))
    assert logits.shape == (B, N_ACTIONS)
    assert jnp.allclose(logits, ref, atol=2e-4, rtol=2e-4), "mismatch vs reference"

    # TODO(synk): obs_net is an injected external module in the original code;
    # it is modeled here as Linear+ReLU. Dropout(0.1) runs in eval (identity) mode.
    print("KERNEL_OK")
</pallas_src>

<mosaic_0001>
module attributes {stable_mosaic.version = 11 : i64} {
  func.func @goal_actor_kernel(%arg0: i32, %arg1: memref<8x16xf32, #tpu.memory_space<vmem>>, %arg2: memref<8x32xf32, #tpu.memory_space<vmem>>, %arg3: memref<8x8xf32, #tpu.memory_space<vmem>>, %arg4: memref<200x128xf32, #tpu.memory_space<vmem>>, %arg5: memref<16x128xf32, #tpu.memory_space<vmem>>, %arg6: memref<8x128xf32, #tpu.memory_space<vmem>>) attributes {dimension_semantics = [#tpu.dimension_semantics<parallel>], iteration_bounds = array<i64: 2>, scalar_prefetch = 0 : i64, scratch_operands = 0 : i64, tpu.core_type = #tpu.core_type<tc>, window_params = [{transform_indices = @transform_0, window_bounds = array<i64: 8, 16>}, {transform_indices = @transform_1, window_bounds = array<i64: 8, 32>}, {transform_indices = @transform_2, window_bounds = array<i64: 8, 8>}, {pipeline_mode = #tpu.pipeline_mode<synchronous>, transform_indices = @transform_3, window_bounds = array<i64: 200, 128>}, {pipeline_mode = #tpu.pipeline_mode<synchronous>, transform_indices = @transform_4, window_bounds = array<i64: 16, 128>}, {transform_indices = @transform_5, window_bounds = array<i64: 8, 128>}]} {
    %c0 = arith.constant 0 : index
    %c0_0 = arith.constant 0 : index
    %0 = vector.load %arg1[%c0, %c0_0] : memref<8x16xf32, #tpu.memory_space<vmem>>, vector<8x16xf32>
    %c0_1 = arith.constant 0 : index
    %c0_2 = arith.constant 0 : index
    %1 = vector.load %arg4[%c0_1, %c0_2] : memref<200x128xf32, #tpu.memory_space<vmem>>, vector<16x32xf32>
    %cst = arith.constant dense<0.000000e+00> : vector<8x32xf32>
    %2 = tpu.matmul %0, %1, %cst {dimension_numbers = #tpu.dot_dimension_numbers<[1], [0], [0], [1], [0, 0, 1, 1], [], []>} : vector<8x16xf32>, vector<16x32xf32>, vector<8x32xf32> -> vector<8x32xf32>
    %c0_3 = arith.constant 0 : index
    %c0_4 = arith.constant 0 : index
    %3 = vector.load %arg5[%c0_3, %c0_4] : memref<16x128xf32, #tpu.memory_space<vmem>>, vector<1x32xf32>
    %4 = vector.broadcast %3 : vector<1x32xf32> to vector<8x32xf32>
    %5 = arith.addf %2, %4 : vector<8x32xf32>
    %cst_5 = arith.constant 0.000000e+00 : f32
    %6 = vector.broadcast %cst_5 : f32 to vector<8x32xf32>
    %7 = arith.maximumf %5, %6 : vector<8x32xf32>
    %c16 = arith.constant 16 : index
    %c0_6 = arith.constant 0 : index
    %8 = vector.load %arg4[%c16, %c0_6] : memref<200x128xf32, #tpu.memory_space<vmem>>, vector<32x64xf32>
    %cst_7 = arith.constant dense<0.000000e+00> : vector<8x64xf32>
    %9 = tpu.matmul %7, %8, %cst_7 {dimension_numbers = #tpu.dot_dimension_numbers<[1], [0], [0], [1], [0, 0, 1, 1], [], []>} : vector<8x32xf32>, vector<32x64xf32>, vector<8x64xf32> -> vector<8x64xf32>
    %c0_8 = arith.constant 0 : index
    %c0_9 = arith.constant 0 : index
    %10 = vector.load %arg2[%c0_8, %c0_9] : memref<8x32xf32, #tpu.memory_space<vmem>>, vector<8x32xf32>
    %c48 = arith.constant 48 : index
    %c0_10 = arith.constant 0 : index
    %11 = vector.load %arg4[%c48, %c0_10] : memref<200x128xf32, #tpu.memory_space<vmem>>, vector<32x64xf32>
    %cst_11 = arith.constant dense<0.000000e+00> : vector<8x64xf32>
    %12 = tpu.matmul %10, %11, %cst_11 {dimension_numbers = #tpu.dot_dimension_numbers<[1], [0], [0], [1], [0, 0, 1, 1], [], []>} : vector<8x32xf32>, vector<32x64xf32>, vector<8x64xf32> -> vector<8x64xf32>
    %13 = arith.addf %9, %12 : vector<8x64xf32>
    %c1 = arith.constant 1 : index
    %c0_12 = arith.constant 0 : index
    %14 = vector.load %arg5[%c1, %c0_12] : memref<16x128xf32, #tpu.memory_space<vmem>>, vector<1x64xf32>
    %15 = vector.broadcast %14 : vector<1x64xf32> to vector<8x64xf32>
    %16 = arith.addf %13, %15 : vector<8x64xf32>
    %17 = tpu.iota {dimensions = array<i32: 1>} : vector<8x64xi32>
    %c32_i32 = arith.constant 32 : i32
    %18 = vector.broadcast %c32_i32 : i32 to vector<8x64xi32>
    %19 = arith.cmpi sge, %17, %18 : vector<8x64xi32>
    %cst_13 = arith.constant 0.000000e+00 : f32
    %20 = vector.broadcast %cst_13 : f32 to vector<8x64xf32>
    %21 = arith.select %19, %20, %16 : vector<8x64xi1>, vector<8x64xf32>
    %cst_14 = arith.constant dense<0.000000e+00> : vector<8xf32>
    %22 = vector.multi_reduction <add>, %21, %cst_14 [1] : vector<8x64xf32> to vector<8xf32>
    %23 = vector.shape_cast %22 : vector<8xf32> to vector<8x1xf32>
    %cst_15 = arith.constant 3.125000e-02 : f32
    %24 = vector.broadcast %cst_15 : f32 to vector<8x1xf32>
    %25 = arith.mulf %23, %24 : vector<8x1xf32>
    %cst_16 = arith.constant 0.000000e+00 : f32
    %26 = vector.broadcast %cst_16 : f32 to vector<8x64xf32>
    %27 = arith.select %19, %16, %26 : vector<8x64xi1>, vector<8x64xf32>
    %cst_17 = arith.constant dense<0.000000e+00> : vector<8xf32>
    %28 = vector.multi_reduction <add>, %27, %cst_17 [1] : vector<8x64xf32> to vector<8xf32>
    %29 = vector.shape_cast %28 : vector<8xf32> to vector<8x1xf32>
    %cst_18 = arith.constant 3.125000e-02 : f32
    %30 = vector.broadcast %cst_18 : f32 to vector<8x1xf32>
    %31 = arith.mulf %29, %30 : vector<8x1xf32>
    %32 = vector.shape_cast %31 : vector<8x1xf32> to vector<8x1xf32>
    %33 = vector.broadcast %32 : vector<8x1xf32> to vector<8x64xf32>
    %34 = vector.shape_cast %25 : vector<8x1xf32> to vector<8x1xf32>
    %35 = vector.broadcast %34 : vector<8x1xf32> to vector<8x64xf32>
    %36 = arith.select %19, %33, %35 : vector<8x64xi1>, vector<8x64xf32>
    %37 = arith.subf %16, %36 : vector<8x64xf32>
    %38 = arith.mulf %37, %37 : vector<8x64xf32>
    %cst_19 = arith.constant 0.000000e+00 : f32
    %39 = vector.broadcast %cst_19 : f32 to vector<8x64xf32>
    %40 = arith.select %19, %39, %38 : vector<8x64xi1>, vector<8x64xf32>
    %cst_20 = arith.constant dense<0.000000e+00> : vector<8xf32>
    %41 = vector.multi_reduction <add>, %40, %cst_20 [1] : vector<8x64xf32> to vector<8xf32>
    %42 = vector.shape_cast %41 : vector<8xf32> to vector<8x1xf32>
    %cst_21 = arith.constant 3.125000e-02 : f32
    %43 = vector.broadcast %cst_21 : f32 to vector<8x1xf32>
    %44 = arith.mulf %42, %43 : vector<8x1xf32>
    %cst_22 = arith.constant 0.000000e+00 : f32
    %45 = vector.broadcast %cst_22 : f32 to vector<8x64xf32>
    %46 = arith.select %19, %38, %45 : vector<8x64xi1>, vector<8x64xf32>
    %cst_23 = arith.constant dense<0.000000e+00> : vector<8xf32>
    %47 = vector.multi_reduction <add>, %46, %cst_23 [1] : vector<8x64xf32> to vector<8xf32>
    %48 = vector.shape_cast %47 : vector<8xf32> to vector<8x1xf32>
    %cst_24 = arith.constant 3.125000e-02 : f32
    %49 = vector.broadcast %cst_24 : f32 to vector<8x1xf32>
    %50 = arith.mulf %48, %49 : vector<8x1xf32>
    %51 = vector.shape_cast %50 : vector<8x1xf32> to vector<8x1xf32>
    %52 = vector.broadcast %51 : vector<8x1xf32> to vector<8x64xf32>
    %53 = vector.shape_cast %44 : vector<8x1xf32> to vector<8x1xf32>
    %54 = vector.broadcast %53 : vector<8x1xf32> to vector<8x64xf32>
    %55 = arith.select %19, %52, %54 : vector<8x64xi1>, vector<8x64xf32>
    %cst_25 = arith.constant 9.99999974E-6 : f32
    %56 = vector.broadcast %cst_25 : f32 to vector<8x64xf32>
    %57 = arith.addf %55, %56 : vector<8x64xf32>
    %58 = math.rsqrt %57 : vector<8x64xf32>
    %59 = arith.mulf %37, %58 : vector<8x64xf32>
    %c2 = arith.constant 2 : index
    %c0_26 = arith.constant 0 : index
    %60 = vector.load %arg5[%c2, %c0_26] : memref<16x128xf32, #tpu.memory_space<vmem>>, vector<1x64xf32>
    %61 = vector.broadcast %60 : vector<1x64xf32> to vector<8x64xf32>
    %62 = arith.mulf %59, %61 : vector<8x64xf32>
    %c3 = arith.constant 3 : index
    %c0_27 = arith.constant 0 : index
    %63 = vector.load %arg5[%c3, %c0_27] : memref<16x128xf32, #tpu.memory_space<vmem>>, vector<1x64xf32>
    %64 = vector.broadcast %63 : vector<1x64xf32> to vector<8x64xf32>
    %65 = arith.addf %62, %64 : vector<8x64xf32>
    %cst_28 = arith.constant 0.000000e+00 : f32
    %66 = vector.broadcast %cst_28 : f32 to vector<8x64xf32>
    %67 = arith.maximumf %65, %66 : vector<8x64xf32>
    %c80 = arith.constant 80 : index
    %c0_29 = arith.constant 0 : index
    %68 = vector.load %arg4[%c80, %c0_29] : memref<200x128xf32, #tpu.memory_space<vmem>>, vector<64x32xf32>
    %cst_30 = arith.constant dense<0.000000e+00> : vector<8x32xf32>
    %69 = tpu.matmul %67, %68, %cst_30 {dimension_numbers = #tpu.dot_dimension_numbers<[1], [0], [0], [1], [0, 0, 1, 1], [], []>} : vector<8x64xf32>, vector<64x32xf32>, vector<8x32xf32> -> vector<8x32xf32>
    %c4 = arith.constant 4 : index
    %c0_31 = arith.constant 0 : index
    %70 = vector.load %arg5[%c4, %c0_31] : memref<16x128xf32, #tpu.memory_space<vmem>>, vector<1x32xf32>
    %71 = vector.broadcast %70 : vector<1x32xf32> to vector<8x32xf32>
    %72 = arith.addf %69, %71 : vector<8x32xf32>
    %cst_32 = arith.constant 0.000000e+00 : f32
    %73 = vector.broadcast %cst_32 : f32 to vector<8x32xf32>
    %74 = arith.maximumf %72, %73 : vector<8x32xf32>
    %c144 = arith.constant 144 : index
    %c0_33 = arith.constant 0 : index
    %75 = vector.load %arg4[%c144, %c0_33] : memref<200x128xf32, #tpu.memory_space<vmem>>, vector<32x16xf32>
    %cst_34 = arith.constant dense<0.000000e+00> : vector<8x16xf32>
    %76 = tpu.matmul %74, %75, %cst_34 {dimension_numbers = #tpu.dot_dimension_numbers<[1], [0], [0], [1], [0, 0, 1, 1], [], []>} : vector<8x32xf32>, vector<32x16xf32>, vector<8x16xf32> -> vector<8x16xf32>
    %c0_35 = arith.constant 0 : index
    %c0_36 = arith.constant 0 : index
    %77 = vector.load %arg3[%c0_35, %c0_36] : memref<8x8xf32, #tpu.memory_space<vmem>>, vector<8x8xf32>
    %c176 = arith.constant 176 : index
    %c0_37 = arith.constant 0 : index
    %78 = vector.load %arg4[%c176, %c0_37] : memref<200x128xf32, #tpu.memory_space<vmem>>, vector<8x16xf32>
    %cst_38 = arith.constant dense<0.000000e+00> : vector<8x16xf32>
    %79 = tpu.matmul %77, %78, %cst_38 {dimension_numbers = #tpu.dot_dimension_numbers<[1], [0], [0], [1], [0, 0, 1, 1], [], []>} : vector<8x8xf32>, vector<8x16xf32>, vector<8x16xf32> -> vector<8x16xf32>
    %80 = arith.addf %76, %79 : vector<8x16xf32>
    %c5 = arith.constant 5 : index
    %c0_39 = arith.constant 0 : index
    %81 = vector.load %arg5[%c5, %c0_39] : memref<16x128xf32, #tpu.memory_space<vmem>>, vector<1x16xf32>
    %82 = vector.broadcast %81 : vector<1x16xf32> to vector<8x16xf32>
    %83 = arith.addf %80, %82 : vector<8x16xf32>
    %cst_40 = arith.constant dense<0.000000e+00> : vector<8xf32>
    %84 = vector.multi_reduction <add>, %83, %cst_40 [1] : vector<8x16xf32> to vector<8xf32>
    %85 = vector.shape_cast %84 : vector<8xf32> to vector<8x1xf32>
    %cst_41 = arith.constant 1.600000e+01 : f32
    %86 = vector.broadcast %cst_41 : f32 to vector<8x1xf32>
    %87 = arith.divf %85, %86 : vector<8x1xf32>
    %88 = vector.broadcast %87 : vector<8x1xf32> to vector<8x16xf32>
    %89 = arith.subf %83, %88 : vector<8x16xf32>
    %90 = arith.mulf %89, %89 : vector<8x16xf32>
    %cst_42 = arith.constant dense<0.000000e+00> : vector<8xf32>
    %91 = vector.multi_reduction <add>, %90, %cst_42 [1] : vector<8x16xf32> to vector<8xf32>
    %92 = vector.shape_cast %91 : vector<8xf32> to vector<8x1xf32>
    %cst_43 = arith.constant 1.600000e+01 : f32
    %93 = vector.broadcast %cst_43 : f32 to vector<8x1xf32>
    %94 = arith.divf %92, %93 : vector<8x1xf32>
    %95 = vector.broadcast %87 : vector<8x1xf32> to vector<8x16xf32>
    %96 = arith.subf %83, %95 : vector<8x16xf32>
    %cst_44 = arith.constant 9.99999974E-6 : f32
    %97 = vector.broadcast %cst_44 : f32 to vector<8x1xf32>
    %98 = arith.addf %94, %97 : vector<8x1xf32>
    %99 = math.rsqrt %98 : vector<8x1xf32>
    %100 = vector.broadcast %99 : vector<8x1xf32> to vector<8x16xf32>
    %101 = arith.mulf %96, %100 : vector<8x16xf32>
    %c6 = arith.constant 6 : index
    %c0_45 = arith.constant 0 : index
    %102 = vector.load %arg5[%c6, %c0_45] : memref<16x128xf32, #tpu.memory_space<vmem>>, vector<1x16xf32>
    %103 = vector.broadcast %102 : vector<1x16xf32> to vector<8x16xf32>
    %104 = arith.mulf %101, %103 : vector<8x16xf32>
    %c7 = arith.constant 7 : index
    %c0_46 = arith.constant 0 : index
    %105 = vector.load %arg5[%c7, %c0_46] : memref<16x128xf32, #tpu.memory_space<vmem>>, vector<1x16xf32>
    %106 = vector.broadcast %105 : vector<1x16xf32> to vector<8x16xf32>
    %107 = arith.addf %104, %106 : vector<8x16xf32>
    %cst_47 = arith.constant 0.000000e+00 : f32
    %108 = vector.broadcast %cst_47 : f32 to vector<8x16xf32>
    %109 = arith.maximumf %107, %108 : vector<8x16xf32>
    %c184 = arith.constant 184 : index
    %c0_48 = arith.constant 0 : index
    %110 = vector.load %arg4[%c184, %c0_48] : memref<200x128xf32, #tpu.memory_space<vmem>>, vector<16x128xf32>
    %cst_49 = arith.constant dense<0.000000e+00> : vector<8x128xf32>
    %111 = tpu.matmul %109, %110, %cst_49 {dimension_numbers = #tpu.dot_dimension_numbers<[1], [0], [0], [1], [0, 0, 1, 1], [], []>} : vector<8x16xf32>, vector<16x128xf32>, vector<8x128xf32> -> vector<8x128xf32>
    %c8 = arith.constant 8 : index
    %c0_50 = arith.constant 0 : index
    %112 = vector.load %arg5[%c8, %c0_50] : memref<16x128xf32, #tpu.memory_space<vmem>>, vector<1x128xf32>
    %113 = vector.broadcast %112 : vector<1x128xf32> to vector<8x128xf32>
    %114 = arith.addf %111, %113 : vector<8x128xf32>
    %c0_51 = arith.constant 0 : index
    %c0_52 = arith.constant 0 : index
    %115 = vector.load %arg6[%c0_51, %c0_52] : memref<8x128xf32, #tpu.memory_space<vmem>>, vector<8x128xf32>
    tpu.vector_store %arg6[%c0_51, %c0_52], %114 {strides = array<i32>} : memref<8x128xf32, #tpu.memory_space<vmem>>, vector<8x128xf32>,
    return
  }
  func.func @transform_0(%arg0: i32) -> (i32, i32) {
    %c0_i32 = arith.constant 0 : i32
    %c0_i32_0 = arith.constant 0 : i32
    return %arg0, %c0_i32 : i32, i32
  }
  func.func @transform_1(%arg0: i32) -> (i32, i32) {
    %c0_i32 = arith.constant 0 : i32
    %c0_i32_0 = arith.constant 0 : i32
    return %arg0, %c0_i32 : i32, i32
  }
  func.func @transform_2(%arg0: i32) -> (i32, i32) {
    %c0_i32 = arith.constant 0 : i32
    %c0_i32_0 = arith.constant 0 : i32
    return %arg0, %c0_i32 : i32, i32
  }
  func.func @transform_3(%arg0: i32) -> (i32, i32) {
    %c0_i32 = arith.constant 0 : i32
    %c0_i32_0 = arith.constant 0 : i32
    %c0_i32_1 = arith.constant 0 : i32
    return %c0_i32, %c0_i32_0 : i32, i32
  }
  func.func @transform_4(%arg0: i32) -> (i32, i32) {
    %c0_i32 = arith.constant 0 : i32
    %c0_i32_0 = arith.constant 0 : i32
    %c0_i32_1 = arith.constant 0 : i32
    return %c0_i32, %c0_i32_0 : i32, i32
  }
  func.func @transform_5(%arg0: i32) -> (i32, i32) {
    %c0_i32 = arith.constant 0 : i32
    %c0_i32_0 = arith.constant 0 : i32
    return %arg0, %c0_i32 : i32, i32
  }
}

</mosaic_0001>

<llo_original>
// kernel: tpu_custom_call.1
$region0: #{tpu_custom_call.1}
  #allocation0 [shape = 'u32[]', space=smem, size = 0x4, offset = 0x4, fixed_abs, tag = 'smem constant byte address 0x4 - core index']
  #allocation1 [shape = 'u32[144,128]{1,0:T(1,128)}', space=vmem, size = 0x12000, scoped, tag = 'internal scratch']
  %s0 = inlined_call_operand.vmem [shape: f32[16,16], index: 0, kind: input, shape index: {}]
  %s1 = inlined_call_operand.hbm [shape: f32[16,32], index: 1, kind: input, shape index: {}]
  %s2 = inlined_call_operand.vmem [shape: f32[16,8], index: 2, kind: input, shape index: {}]
  %s3 = inlined_call_operand.hbm [shape: f32[200,128], index: 3, kind: input, shape index: {}]
  %s4 = inlined_call_operand.vmem [shape: f32[16,128], index: 4, kind: input, shape index: {}]
  %s5 = inlined_call_operand.hbm [shape: f32[16,128], index: 5, kind: output, shape index: {}]
  %s6 = sld [smem:[#allocation0]]
  $region61: #{tpu_custom_call.1} parent=0
    _
  %s8 = ssub.s32 1, %s6
  %s9 = scalar_select 0, %s8, %s6
  $region1: #{tpu_custom_call.1} parent=0
    #allocation2 [shape = 'u8[8192]{0}', space=vmem, size = 0x2000, scoped, tag = 'input window, operand 1']
    #allocation3 [shape = 's32[2]{0}', space=sflag, size = 0x8, scoped, tag = 'scoped memory for tpu_custom_call.1']
    #allocation4 [shape = 's32[2]{0}', space=sflag, size = 0x8, scoped, tag = 'scoped memory for tpu_custom_call.1']
    #allocation5 [shape = 'u8[102400]{0}', space=vmem, size = 0x19000, scoped, tag = 'input window, operand 3, single buffered']
    #allocation6 [shape = 's32[1]{0}', space=sflag, size = 0x4, scoped, tag = 'scoped memory for tpu_custom_call.1']
    #allocation7 [shape = 'u8[8192]{0}', space=vmem, size = 0x2000, scoped, tag = 'output window, operand 0']
    %10 = vsyncpa [#allocation3], 0
    %s11 = scalar_lea.sflag [#allocation3], 1
    %12 = vsyncpa %s11, 0
    %13 = vsyncpa [#allocation6], 0
    %14 = vsyncpa [#allocation4], 0
    %s15 = scalar_lea.sflag [#allocation4], 1
    %16 = vsyncpa %s15, 0
    loop: start=0, step=1, limit=4
    $region2: #{tpu_custom_call.1} parent=1 // loop_pre_header
      _
    $region3: #{tpu_custom_call.1} parent=1 // loop_header
      %s18 = sphi 0, %s22
      %p19 = scmp.ge.s32.totalorder %s18, 4
      %s28 = sphi 0, %s30
      %s31 = sphi 0, %s28
      %s32 = sphi 0, %s31
      %s48 = sphi 0, %s32
      %s54 = sphi 0, %s56
      %s57 = sphi 0, %s54
      %s58 = sphi 0, %s57
      %s74 = sphi 0, %s58
      %s80 = sphi 0, %s82
      %s83 = sphi 0, %s80
      %s84 = sphi 0, %s83
      %s100 = sphi 0, %s84
      %s104 = sphi 0, %s104
      %s106 = sphi 0, %s104
      %s107 = sphi 0, %s106
      %s121 = sphi 0, %s107
      %s125 = sphi 0, %s125
      %s127 = sphi 0, %s125
      %s128 = sphi 0, %s127
      %s142 = sphi 0, %s128
      %s148 = sphi 0, %s150
      %s151 = sphi 0, %s148
      %s152 = sphi 0, %s151
      %s168 = sphi 0, %s152
    $region4: #{tpu_custom_call.1} parent=1 // loop_header_branch
      %21 = sbr.rel (%p19) target = $region8
    $region5: #{tpu_custom_call.1} parent=1 // loop_body
      %s23 = ssub.s32 %s18, 1
      %s24 = ssub.s32 %s18, 2
      %s25 = sadd.s32 %s18, 1
      %s26 = ssub.s32 %s18, %s25
      %p27 = scmp.eq.s32.totalorder %s26, 0
      %s29 = sadd.s32 %s28, 1
      %s30 = scalar_select %p27, %s28, %s29
      %p33 = pneg %p27
      %p34 = scmp.eq.s32.totalorder %s18, 1
      %p35 = por %p33, %p34
      %p36 = scmp.ne.s32.totalorder %s28, %s31
      %p37 = scmp.eq.s32.totalorder %s18, 0
      %p38 = por %p36, %p37
      %p39 = scmp.ne.s32.totalorder %s28, %s31
      %p40 = scmp.eq.s32.totalorder %s23, 1
      %p41 = por %p39, %p40
      %p42 = scmp.ne.s32.totalorder %s31, %s32
      %p43 = scmp.eq.s32.totalorder %s23, 0
      %p44 = por %p42, %p43
      %p45 = scmp.ne.s32.totalorder %s31, %s32
      %p46 = scmp.eq.s32.totalorder %s24, 1
      %p47 = por %p45, %p46
      %p49 = scmp.ne.s32.totalorder %s32, %s48
      %p50 = scmp.eq.s32.totalorder %s24, 0
      %p51 = por %p49, %p50
      %s52 = ssub.s32 %s18, %s25
      %p53 = scmp.eq.s32.totalorder %s52, 0
      %s55 = sadd.s32 %s54, 1
      %s56 = scalar_select %p53, %s54, %s55
      %p59 = pneg %p53
      %p60 = scmp.eq.s32.totalorder %s18, 1
      %p61 = por %p59, %p60
      %p62 = scmp.ne.s32.totalorder %s54, %s57
      %p63 = scmp.eq.s32.totalorder %s18, 0
      %p64 = por %p62, %p63
      %p65 = scmp.ne.s32.totalorder %s54, %s57
      %p66 = scmp.eq.s32.totalorder %s23, 1
      %p67 = por %p65, %p66
      %p68 = scmp.ne.s32.totalorder %s57, %s58
      %p69 = scmp.eq.s32.totalorder %s23, 0
      %p70 = por %p68, %p69
      %p71 = scmp.ne.s32.totalorder %s57, %s58
      %p72 = scmp.eq.s32.totalorder %s24, 1
      %p73 = por %p71, %p72
      %p75 = scmp.ne.s32.totalorder %s58, %s74
      %p76 = scmp.eq.s32.totalorder %s24, 0
      %p77 = por %p75, %p76
      %s78 = ssub.s32 %s18, %s25
      %p79 = scmp.eq.s32.totalorder %s78, 0
      %s81 = sadd.s32 %s80, 1
      %s82 = scalar_select %p79, %s80, %s81
      %p85 = pneg %p79
      %p86 = scmp.eq.s32.totalorder %s18, 1
      %p87 = por %p85, %p86
      %p88 = scmp.ne.s32.totalorder %s80, %s83
      %p89 = scmp.eq.s32.totalorder %s18, 0
      %p90 = por %p88, %p89
      %p91 = scmp.ne.s32.totalorder %s80, %s83
      %p92 = scmp.eq.s32.totalorder %s23, 1
      %p93 = por %p91, %p92
      %p94 = scmp.ne.s32.totalorder %s83, %s84
      %p95 = scmp.eq.s32.totalorder %s23, 0
      %p96 = por %p94, %p95
      %p97 = scmp.ne.s32.totalorder %s83, %s84
      %p98 = scmp.eq.s32.totalorder %s24, 1
      %p99 = por %p97, %p98
      %p101 = scmp.ne.s32.totalorder %s84, %s100
      %p102 = scmp.eq.s32.totalorder %s24, 0
      %p103 = por %p101, %p102
      %s105 = sadd.s32 %s104, 1
      %p108 = scmp.eq.s32.totalorder %s18, 1
      %p109 = scmp.ne.s32.totalorder %s104, %s106
      %p110 = scmp.eq.s32.totalorder %s18, 0
      %p111 = por %p109, %p110
      %p112 = scmp.ne.s32.totalorder %s104, %s106
      %p113 = scmp.eq.s32.totalorder %s23, 1
      %p114 = por %p112, %p113
      %p115 = scmp.ne.s32.totalorder %s106, %s107
      %p116 = scmp.eq.s32.totalorder %s23, 0
      %p117 = por %p115, %p116
      %p118 = scmp.ne.s32.totalorder %s106, %s107
      %p119 = scmp.eq.s32.totalorder %s24, 1
      %p120 = por %p118, %p119
      %p122 = scmp.ne.s32.totalorder %s107, %s121
      %p123 = scmp.eq.s32.totalorder %s24, 0
      %p124 = por %p122, %p123
      %s126 = sadd.s32 %s125, 1
      %p129 = scmp.eq.s32.totalorder %s18, 1
      %p130 = scmp.ne.s32.totalorder %s125, %s127
      %p131 = scmp.eq.s32.totalorder %s18, 0
      %p132 = por %p130, %p131
      %p133 = scmp.ne.s32.totalorder %s125, %s127
      %p134 = scmp.eq.s32.totalorder %s23, 1
      %p135 = por %p133, %p134
      %p136 = scmp.ne.s32.totalorder %s127, %s128
      %p137 = scmp.eq.s32.totalorder %s23, 0
      %p138 = por %p136, %p137
      %p139 = scmp.ne.s32.totalorder %s127, %s128
      %p140 = scmp.eq.s32.totalorder %s24, 1
      %p141 = por %p139, %p140
      %p143 = scmp.ne.s32.totalorder %s128, %s142
      %p144 = scmp.eq.s32.totalorder %s24, 0
      %p145 = por %p143, %p144
      %s146 = ssub.s32 %s18, %s25
      %p147 = scmp.eq.s32.totalorder %s146, 0
      %s149 = sadd.s32 %s148, 1
      %s150 = scalar_select %p147, %s148, %s149
      %p153 = pneg %p147
      %p154 = scmp.eq.s32.totalorder %s18, 1
      %p155 = por %p153, %p154
      %p156 = scmp.ne.s32.totalorder %s148, %s151
      %p157 = scmp.eq.s32.totalorder %s18, 0
      %p158 = por %p156, %p157
      %p159 = scmp.ne.s32.totalorder %s148, %s151
      %p160 = scmp.eq.s32.totalorder %s23, 1
      %p161 = por %p159, %p160
      %p162 = scmp.ne.s32.totalorder %s151, %s152
      %p163 = scmp.eq.s32.totalorder %s23, 0
      %p164 = por %p162, %p163
      %p165 = scmp.ne.s32.totalorder %s151, %s152
      %p166 = scmp.eq.s32.totalorder %s24, 1
      %p167 = por %p165, %p166
      %p169 = scmp.ne.s32.totalorder %s152, %s168
      %p170 = scmp.eq.s32.totalorder %s24, 0
      %p171 = por %p169, %p170
      %p172 = scmp.le.s32.totalorder 1, %s18
      %p173 = scmp.lt.s32.totalorder %s18, 3
      %p174 = pnand %p172, %p173
      %p175 = pneg %p174
      // Predicated region
      $region9: #{tpu_custom_call.1} parent=5 // pred_check
        _
      $region10: #{tpu_custom_call.1} parent=5 // pred_check_branch
        %177 = sbr.rel (%p174) target = $region12
      $region11: #{tpu_custom_call.1} parent=5 // pred_region
        %s178 = ssub.s32 %s18, 1
        // Predicated region
        $region13: #{tpu_custom_call.1} parent=11 // pred_check
          %p179 = pneg %p117
        $region14: #{tpu_custom_call.1} parent=11 // pred_check_branch
          %181 = sbr.rel (%p179) target = $region16
        $region15: #{tpu_custom_call.1} parent=11 // pred_region
          %s183 = ssub.s32 3200, 3200
          %184 = vsyncadd [#allocation6], %s183
          %s185 = sshll.u32 [#allocation5], 4
          %s186 = int_to_ptr.vmem [resolvable:$true] %s185
          %191 = dma.hbm_to_vmem [thread:$0]  %s3, 3200, %s186, [#allocation6], 128, 128, 8
        $region16: #{tpu_custom_call.1} parent=11 // pred_fallthru
          _
        // Predicated region
        $region17: #{tpu_custom_call.1} parent=11 // pred_check
          %p192 = pneg %p138
        $region18: #{tpu_custom_call.1} parent=11 // pred_check_branch
          %194 = sbr.rel (%p192) target = $region20
        $region19: #{tpu_custom_call.1} parent=11 // pred_region
          _
        $region20: #{tpu_custom_call.1} parent=11 // pred_fallthru
          _
      $region12: #{tpu_custom_call.1} parent=5 // pred_fallthru
        _
      %p195 = scmp.lt.s32.totalorder %s18, 2
      // Predicated region
      $region21: #{tpu_custom_call.1} parent=5 // pred_check
        %p196 = pneg %p195
      $region22: #{tpu_custom_call.1} parent=5 // pred_check_branch
        %198 = sbr.rel (%p196) target = $region24
      $region23: #{tpu_custom_call.1} parent=5 // pred_region
        // Predicated region
        $region25: #{tpu_custom_call.1} parent=23 // pred_check
          %p199 = pneg %p38
        $region26: #{tpu_custom_call.1} parent=23 // pred_check_branch
          %201 = sbr.rel (%p199) target = $region28
        $region27: #{tpu_custom_call.1} parent=23 // pred_region
          %p202 = scmp.lt.s32.totalorder %s18, 1
          %s203 = scalar_select %p202, %s18, 1
          %s204 = smul.addr %s203, 8
          %s205 = scalar_lea.vmem %s0, %s204
        $region28: #{tpu_custom_call.1} parent=23 // pred_fallthru
          _
        // Predicated region
        $region29: #{tpu_custom_call.1} parent=23 // pred_check
          %p206 = pneg %p64
        $region30: #{tpu_custom_call.1} parent=23 // pred_check_branch
          %208 = sbr.rel (%p206) target = $region32
        $region31: #{tpu_custom_call.1} parent=23 // pred_region
          %s209 = sand.u32 %s54, 1
          %s210 = scalar_lea.sflag [#allocation3], %s209
          %s211 = sand.u32 %s54, 1
          %s212 = smul.addr %s211, 8
          %s213 = scalar_lea.vmem [#allocation2], %s212
          %s215 = ssub.s32 128, 128
          %216 = vsyncadd %s210, %s215
          %s217 = smul.addr %s18, 128
          %s218 = scalar_lea.hbm %s1, %s217
          %s220 = sshll.u32 %s213, 4
          %s221 = int_to_ptr.vmem [resolvable:$true] %s220
          %223 = dma.hbm_to_vmem [thread:$0]  %s218, 128, %s221, %s210
        $region32: #{tpu_custom_call.1} parent=23 // pred_fallthru
          _
        // Predicated region
        $region33: #{tpu_custom_call.1} parent=23 // pred_check
          %p224 = pneg %p90
        $region34: #{tpu_custom_call.1} parent=23 // pred_check_branch
          %226 = sbr.rel (%p224) target = $region36
        $region35: #{tpu_custom_call.1} parent=23 // pred_region
          %p227 = scmp.lt.s32.totalorder %s18, 1
          %s228 = scalar_select %p227, %s18, 1
          %s229 = smul.addr %s228, 8
          %s230 = scalar_lea.vmem %s2, %s229
        $region36: #{tpu_custom_call.1} parent=23 // pred_fallthru
          _
      $region24: #{tpu_custom_call.1} parent=5 // pred_fallthru
        _
      %p231 = scmp.le.s32.totalorder 1, %s18
      %p232 = scmp.lt.s32.totalorder %s18, 3
      %p233 = pnand %p231, %p232
      %p234 = pneg %p233
      // Predicated region
      $region37: #{tpu_custom_call.1} parent=5 // pred_check
        _
      $region38: #{tpu_custom_call.1} parent=5 // pred_check_branch
        %236 = sbr.rel (%p233) target = $region40
      $region39: #{tpu_custom_call.1} parent=5 // pred_region
        %s237 = ssub.s32 %s18, 1
        %s238 = sand.u32 %s57, 1
        %s239 = scalar_lea.sflag [#allocation3], %s238
        %s240 = sand.u32 %s57, 1
        %s241 = smul.addr %s240, 8
        %s242 = scalar_lea.vmem [#allocation2], %s241
        // Predicated region
        $region41: #{tpu_custom_call.1} parent=39 // pred_check
          %p243 = pneg %p70
        $region42: #{tpu_custom_call.1} parent=39 // pred_check_branch
          %245 = sbr.rel (%p243) target = $region44
        $region43: #{tpu_custom_call.1} parent=39 // pred_region
          %246 = dma.done %s239, 128
        $region44: #{tpu_custom_call.1} parent=39 // pred_fallthru
          _
        // Predicated region
        $region45: #{tpu_custom_call.1} parent=39 // pred_check
          %p247 = pneg %p117
        $region46: #{tpu_custom_call.1} parent=39 // pred_check_branch
          %249 = sbr.rel (%p247) target = $region48
        $region47: #{tpu_custom_call.1} parent=39 // pred_region
          %250 = dma.done [#allocation6], 3200
        $region48: #{tpu_custom_call.1} parent=39 // pred_fallthru
          _
        %p251 = scmp.lt.s32.totalorder %s23, 1
        %s252 = scalar_select %p251, %s23, 1
        %s253 = smul.addr %s252, 8
        %s254 = scalar_lea.vmem %s0, %s253
        %p255 = pneg %p44
        %p256 = pneg %p41
        %s257 = sand.u32 %s57, 1
        %s258 = scalar_lea.sflag [#allocation3], %s257
        %s259 = sand.u32 %s57, 1
        %s260 = smul.addr %s259, 8
        %s261 = scalar_lea.vmem [#allocation2], %s260
        %p262 = pneg %p70
        %p263 = pneg %p67
        %p264 = scmp.lt.s32.totalorder %s23, 1
        %s265 = scalar_select %p264, %s23, 1
        %s266 = smul.addr %s265, 8
        %s267 = scalar_lea.vmem %s2, %s266
        %p268 = pneg %p96
        %p269 = pneg %p93
        %p270 = pneg %p117
        %p271 = pneg %p114
        %p272 = pneg %p138
        %p273 = pneg %p135
        %p274 = pneg %p164
        %p275 = pneg %p161
        %s276 = sand.u32 %s151, 1
        %s277 = scalar_lea.sflag [#allocation4], %s276
        %s278 = sand.u32 %s151, 1
        %s279 = smul.addr %s278, 8
        %s280 = scalar_lea.vmem [#allocation7], %s279
        %p281 = scmp.lt.s32.totalorder %s23, 1
        %s282 = scalar_select %p281, %s23, 1
        %s283 = smul.addr %s282, 8
        %s284 = scalar_lea.vmem %s0, %s283
        %p285 = scmp.lt.s32.totalorder %s23, 1
        %s286 = scalar_select %p285, %s23, 1
        %s287 = smul.addr %s286, 8
        %s288 = scalar_lea.vmem %s2, %s287
        %v289 = vld [vmem:[%s284] sm:$0xff]
        %v290 = vld [vmem:[#allocation5] sm:$0xff]
        %v291 = vld [vmem:[#allocation5 + $0x8] sm:$0xff]
        %v292 = vld [vmem:[%s4] sm:$0x1]
        %v293 = vlaneseq
        %v294 = vshrl.u32 %v293, 7
        %v295 = vsub.s32 0, %v294
        %v296 = vrot.slane %v292, %v295
        %vm297 = vcmask 130048
        %v299 = vsel %vm297, %v289, 0
        %301 = vmatprep.subr.mxu0 0.0
        %302 = vmatpush1.msra.mxu0 %v290
        %303 = vmatprep.subr.mxu0 0.0
        %304 = vmatpush1.msra.mxu0 %v291
        %305 = vmatprep.subr.mxu0 0.0
        %306 = vmatpush1.msra.mxu0 0.0
        %307 = vmatprep.subr.mxu0 0.0
        %308 = vmatpush1.msra.mxu0 0.0
        %309 = vmatprep.subr.mxu0 0.0
        %310 = vmatpush1.msra.mxu0 0.0
        %311 = vmatprep.subr.mxu0 0.0
        %312 = vmatpush1.msra.mxu0 0.0
        %313 = vmatprep.subr.mxu0 0.0
        %314 = vmatpush1.msra.mxu0 0.0
        %315 = vmatprep.subr.mxu0 0.0
        %316 = vmatpush1.msra.mxu0 0.0
        %317 = vmatprep.subr.mxu0 0.0
        %318 = vmatpush1.msra.mxu0 0.0
        %319 = vmatprep.subr.mxu0 0.0
        %320 = vmatpush1.msra.mxu0 0.0
        %321 = vmatprep.subr.mxu0 0.0
        %322 = vmatpush1.msra.mxu0 0.0
        %323 = vmatprep.subr.mxu0 0.0
        %324 = vmatpush1.msra.mxu0 0.0
        %325 = vmatprep.subr.mxu0 0.0
        %326 = vmatpush1.msra.mxu0 0.0
        %327 = vmatprep.subr.mxu0 0.0
        %328 = vmatpush1.msra.mxu0 0.0
        %329 = vmatprep.subr.mxu0 0.0
        %330 = vmatpush1.msra.mxu0 0.0
        %331 = vmatprep.subr.mxu0 0.0
        %332 = vmatpush1.msra.mxu0 0.0
        %333 = vmatprep.subr.mxu0 0.0
        %334 = vmatpush1.msra.mxu0 0.0
        %335 = vmatprep.subr.mxu0 0.0
        %336 = vmatpush1.msra.mxu0 0.0
        %337 = vmatprep.subr.mxu0 0.0
        %338 = vmatpush1.msra.mxu0 0.0
        %339 = vmatprep.subr.mxu0 0.0
        %340 = vmatpush1.msra.mxu0 0.0
        %341 = vmatprep.subr.mxu0 0.0
        %342 = vmatpush1.msra.mxu0 0.0
        %343 = vmatprep.subr.mxu0 0.0
        %344 = vmatpush1.msra.mxu0 0.0
        %345 = vmatprep.subr.mxu0 0.0
        %346 = vmatpush1.msra.mxu0 0.0
        %347 = vmatprep.subr.mxu0 0.0
        %348 = vmatpush1.msra.mxu0 0.0
        %349 = vmatprep.subr.mxu0 0.0
        %350 = vmatpush1.msra.mxu0 0.0
        %351 = vmatprep.subr.mxu0 0.0
        %352 = vmatpush1.msra.mxu0 0.0
        %353 = vmatprep.subr.mxu0 0.0
        %354 = vmatpush1.msra.mxu0 0.0
        %355 = vmatprep.subr.mxu0 0.0
        %356 = vmatpush1.msra.mxu0 0.0
        %357 = vmatprep.subr.mxu0 0.0
        %358 = vmatpush1.msra.mxu0 0.0
        %359 = vmatprep.subr.mxu0 0.0
        %360 = vmatpush1.msra.mxu0 0.0
        %361 = vmatprep.subr.mxu0 0.0
        %362 = vmatpush1.msra.mxu0 0.0
        %363 = vmatprep.subr.mxu0 0.0
        %364 = vmatpush1.msra.mxu0 0.0
        %365 = vmatprep.mubr.f32.mxu0 0.0
        %366 = vmatmul.mubr.f32.gmra.mrb[0].mxu0 %v299
        %v367 = vpop.f32.mrb[0].mxu0
        %v368 = vadd.f32 %v296, %v367
        %v369 = vpop.f32.mrb[0].mxu0
        %370 = vdwg.mxu0
        %v371 = vmax.f32 %v368, 0.0
        %v372 = vld [vmem:[#allocation5 + $0x10] sm:$0xff]
        %v373 = vld [vmem:[#allocation5 + $0x18] sm:$0xff]
        %v374 = vld [vmem:[#allocation5 + $0x20] sm:$0xff]
        %v375 = vld [vmem:[#allocation5 + $0x28] sm:$0xff]
        %v376 = vld [vmem:[%s242] sm:$0xff]
        %v377 = vld [vmem:[#allocation5 + $0x30] sm:$0xff]
        %v378 = vld [vmem:[#allocation5 + $0x38] sm:$0xff]
        %v379 = vld [vmem:[#allocation5 + $0x40] sm:$0xff]
        %v380 = vld [vmem:[#allocation5 + $0x48] sm:$0xff]
        %vm381 = vcmask 261120
        %v383 = vsel %vm381, %v376, 0
        %385 = vmatprep.subr.mxu0 0.0
        %386 = vmatpush1.msra.mxu0 %v377
        %387 = vmatprep.subr.mxu0 0.0
        %388 = vmatpush1.msra.mxu0 %v378
        %389 = vmatprep.subr.mxu0 0.0
        %390 = vmatpush1.msra.mxu0 %v379
        %391 = vmatprep.subr.mxu0 0.0
        %392 = vmatpush1.msra.mxu0 %v380
        %393 = vmatprep.subr.mxu0 0.0
        %394 = vmatpush1.msra.mxu0 0.0
        %395 = vmatprep.subr.mxu0 0.0
        %396 = vmatpush1.msra.mxu0 0.0
        %397 = vmatprep.subr.mxu0 0.0
        %398 = vmatpush1.msra.mxu0 0.0
        %399 = vmatprep.subr.mxu0 0.0
        %400 = vmatpush1.msra.mxu0 0.0
        %401 = vmatprep.subr.mxu0 0.0
        %402 = vmatpush1.msra.mxu0 0.0
        %403 = vmatprep.subr.mxu0 0.0
        %404 = vmatpush1.msra.mxu0 0.0
        %405 = vmatprep.subr.mxu0 0.0
        %406 = vmatpush1.msra.mxu0 0.0
        %407 = vmatprep.subr.mxu0 0.0
        %408 = vmatpush1.msra.mxu0 0.0
        %409 = vmatprep.subr.mxu0 0.0
        %410 = vmatpush1.msra.mxu0 0.0
        %411 = vmatprep.subr.mxu0 0.0
        %412 = vmatpush1.msra.mxu0 0.0
        %413 = vmatprep.subr.mxu0 0.0
        %414 = vmatpush1.msra.mxu0 0.0
        %415 = vmatprep.subr.mxu0 0.0
        %416 = vmatpush1.msra.mxu0 0.0
        %417 = vmatprep.subr.mxu0 0.0
        %418 = vmatpush1.msra.mxu0 0.0
        %419 = vmatprep.subr.mxu0 0.0
        %420 = vmatpush1.msra.mxu0 0.0
        %421 = vmatprep.subr.mxu0 0.0
        %422 = vmatpush1.msra.mxu0 0.0
        %423 = vmatprep.subr.mxu0 0.0
        %424 = vmatpush1.msra.mxu0 0.0
        %425 = vmatprep.subr.mxu0 0.0
        %426 = vmatpush1.msra.mxu0 0.0
        %427 = vmatprep.subr.mxu0 0.0
        %428 = vmatpush1.msra.mxu0 0.0
        %429 = vmatprep.subr.mxu0 0.0
        %430 = vmatpush1.msra.mxu0 0.0
        %431 = vmatprep.subr.mxu0 0.0
        %432 = vmatpush1.msra.mxu0 0.0
        %433 = vmatprep.subr.mxu0 0.0
        %434 = vmatpush1.msra.mxu0 0.0
        %435 = vmatprep.subr.mxu0 0.0
        %436 = vmatpush1.msra.mxu0 0.0
        %437 = vmatprep.subr.mxu0 0.0
        %438 = vmatpush1.msra.mxu0 0.0
        %439 = vmatprep.subr.mxu0 0.0
        %440 = vmatpush1.msra.mxu0 0.0
        %441 = vmatprep.subr.mxu0 0.0
        %442 = vmatpush1.msra.mxu0 0.0
        %443 = vmatprep.subr.mxu0 0.0
        %444 = vmatpush1.msra.mxu0 0.0
        %445 = vmatprep.subr.mxu0 0.0
        %446 = vmatpush1.msra.mxu0 0.0
        %447 = vmatprep.subr.mxu0 0.0
        %448 = vmatpush1.msra.mxu0 0.0
        %449 = vmatprep.mubr.f32.mxu0 0.0
        %450 = vmatmul.mubr.f32.gmra.mrb[0].mxu0 %v383
        %v451 = vpop.f32.mrb[0].mxu0
        %v452 = vadd.f32 0.0, %v451
        %v453 = vpop.f32.mrb[0].mxu0
        %454 = vdwg.mxu0
        %v456 = vsel %vm381, %v371, 0
        %458 = vmatprep.subr.mxu0 0.0
        %459 = vmatpush1.msra.mxu0 %v372
        %460 = vmatprep.subr.mxu0 0.0
        %461 = vmatpush1.msra.mxu0 %v373
        %462 = vmatprep.subr.mxu0 0.0
        %463 = vmatpush1.msra.mxu0 %v374
        %464 = vmatprep.subr.mxu0 0.0
        %465 = vmatpush1.msra.mxu0 %v375
        %466 = vmatprep.subr.mxu0 0.0
        %467 = vmatpush1.msra.mxu0 0.0
        %468 = vmatprep.subr.mxu0 0.0
        %469 = vmatpush1.msra.mxu0 0.0
        %470 = vmatprep.subr.mxu0 0.0
        %471 = vmatpush1.msra.mxu0 0.0
        %472 = vmatprep.subr.mxu0 0.0
        %473 = vmatpush1.msra.mxu0 0.0
        %474 = vmatprep.subr.mxu0 0.0
        %475 = vmatpush1.msra.mxu0 0.0
        %476 = vmatprep.subr.mxu0 0.0
        %477 = vmatpush1.msra.mxu0 0.0
        %478 = vmatprep.subr.mxu0 0.0
        %479 = vmatpush1.msra.mxu0 0.0
        %480 = vmatprep.subr.mxu0 0.0
        %481 = vmatpush1.msra.mxu0 0.0
        %482 = vmatprep.subr.mxu0 0.0
        %483 = vmatpush1.msra.mxu0 0.0
        %484 = vmatprep.subr.mxu0 0.0
        %485 = vmatpush1.msra.mxu0 0.0
        %486 = vmatprep.subr.mxu0 0.0
        %487 = vmatpush1.msra.mxu0 0.0
        %488 = vmatprep.subr.mxu0 0.0
        %489 = vmatpush1.msra.mxu0 0.0
        %490 = vmatprep.subr.mxu0 0.0
        %491 = vmatpush1.msra.mxu0 0.0
        %492 = vmatprep.subr.mxu0 0.0
        %493 = vmatpush1.msra.mxu0 0.0
        %494 = vmatprep.subr.mxu0 0.0
        %495 = vmatpush1.msra.mxu0 0.0
        %496 = vmatprep.subr.mxu0 0.0
        %497 = vmatpush1.msra.mxu0 0.0
        %498 = vmatprep.subr.mxu0 0.0
        %499 = vmatpush1.msra.mxu0 0.0
        %500 = vmatprep.subr.mxu0 0.0
        %501 = vmatpush1.msra.mxu0 0.0
        %502 = vmatprep.subr.mxu0 0.0
        %503 = vmatpush1.msra.mxu0 0.0
        %504 = vmatprep.subr.mxu0 0.0
        %505 = vmatpush1.msra.mxu0 0.0
        %506 = vmatprep.subr.mxu0 0.0
        %507 = vmatpush1.msra.mxu0 0.0
        %508 = vmatprep.subr.mxu0 0.0
        %509 = vmatpush1.msra.mxu0 0.0
        %510 = vmatprep.subr.mxu0 0.0
        %511 = vmatpush1.msra.mxu0 0.0
        %512 = vmatprep.subr.mxu0 0.0
        %513 = vmatpush1.msra.mxu0 0.0
        %514 = vmatprep.subr.mxu0 0.0
        %515 = vmatpush1.msra.mxu0 0.0
        %516 = vmatprep.subr.mxu0 0.0
        %517 = vmatpush1.msra.mxu0 0.0
        %518 = vmatprep.subr.mxu0 0.0
        %519 = vmatpush1.msra.mxu0 0.0
        %520 = vmatprep.subr.mxu0 0.0
        %521 = vmatpush1.msra.mxu0 0.0
        %522 = vmatprep.mubr.f32.mxu0 0.0
        %523 = vmatmul.mubr.f32.gmra.mrb[0].mxu0 %v456
        %v524 = vpop.f32.mrb[0].mxu0
        %v525 = vadd.f32 %v452, %v524
        %v526 = vpop.f32.mrb[0].mxu0
        %527 = vdwg.mxu0
        %v528 = vld [vmem:[%s4 + $0x1] sm:$0x1]
        %v529 = vlaneseq
        %v530 = vshrl.u32 %v529, 7
        %v531 = vsub.s32 0, %v530
        %v532 = vrot.slane %v528, %v531
        %v533 = vadd.f32 %v525, %v532
        %v534 = vlaneseq
        %v535 = vand.u32 %v534, 127
        %vm536 = vcmp.ge.s32.totalorder %v535, 32
        %v537 = vsel %vm536, 0.0, %v533
        %vm538 = vcmask 523264
        %v539 = vsel %vm538, %v537, 0.0
        %540 = vadd.xlane.f32.xlu0 %v539
        %v541 = vpop.xlane.xlu0 %540
        %v542 = vmul.f32 %v541, 0.03125
        %v543 = vsel %vm536, %v533, 0.0
        %v544 = vsel %vm538, %v543, 0.0
        %545 = vadd.xlane.f32.xlu0 %v544
        %v546 = vpop.xlane.xlu0 %545
        %v547 = vmul.f32 %v546, 0.03125
        %v548 = vsel %vm536, %v547, %v542
        %v549 = vsub.f32 %v533, %v548
        %v550 = vmul.f32 %v549, %v549
        %v551 = vsel %vm536, 0.0, %v550
        %v552 = vsel %vm538, %v551, 0.0
        %553 = vadd.xlane.f32.xlu0 %v552
        %v554 = vpop.xlane.xlu0 %553
        %v555 = vmul.f32 %v554, 0.03125
        %v556 = vsel %vm536, %v550, 0.0
        %v557 = vsel %vm538, %v556, 0.0
        %558 = vadd.xlane.f32.xlu0 %v557
        %v559 = vpop.xlane.xlu0 %558
        %v560 = vmul.f32 %v559, 0.03125
        %v561 = vsel %vm536, %v560, %v555
        %v562 = vadd.f32 %v561, 1e-05
        %v563 = vrsqrt.pop %v562
        %v564 = vmul.f32 %v549, %v563
        %v565 = vld [vmem:[%s4 + $0x2] sm:$0x1]
        %v566 = vlaneseq
        %v567 = vshrl.u32 %v566, 7
        %v568 = vsub.s32 0, %v567
        %v569 = vrot.slane %v565, %v568
        %v570 = vmul.f32 %v564, %v569
        %v571 = vld [vmem:[%s4 + $0x3] sm:$0x1]
        %v572 = vlaneseq
        %v573 = vshrl.u32 %v572, 7
        %v574 = vsub.s32 0, %v573
        %v575 = vrot.slane %v571, %v574
        %v576 = vadd.f32 %v570, %v575
        %v577 = vmax.f32 %v576, 0.0
        %v578 = vld [vmem:[#allocation5 + $0x50] sm:$0xff]
        %v579 = vld [vmem:[#allocation5 + $0x58] sm:$0xff]
        %v580 = vld [vmem:[#allocation5 + $0x60] sm:$0xff]
        %v581 = vld [vmem:[#allocation5 + $0x68] sm:$0xff]
        %v582 = vld [vmem:[#allocation5 + $0x70] sm:$0xff]
        %v583 = vld [vmem:[#allocation5 + $0x78] sm:$0xff]
        %v584 = vld [vmem:[#allocation5 + $0x80] sm:$0xff]
        %v585 = vld [vmem:[#allocation5 + $0x88] sm:$0xff]
        %v586 = vld [vmem:[%s4 + $0x4] sm:$0x1]
        %v587 = vlaneseq
        %v588 = vshrl.u32 %v587, 7
        %v589 = vsub.s32 0, %v588
        %v590 = vrot.slane %v586, %v589
        %v592 = vsel %vm538, %v577, 0
        %594 = vmatprep.subr.mxu0 0.0
        %595 = vmatpush1.msra.mxu0 %v578
        %596 = vmatprep.subr.mxu0 0.0
        %597 = vmatpush1.msra.mxu0 %v579
        %598 = vmatprep.subr.mxu0 0.0
        %599 = vmatpush1.msra.mxu0 %v580
        %600 = vmatprep.subr.mxu0 0.0
        %601 = vmatpush1.msra.mxu0 %v581
        %602 = vmatprep.subr.mxu0 0.0
        %603 = vmatpush1.msra.mxu0 %v582
        %604 = vmatprep.subr.mxu0 0.0
        %605 = vmatpush1.msra.mxu0 %v583
        %606 = vmatprep.subr.mxu0 0.0
        %607 = vmatpush1.msra.mxu0 %v584
        %608 = vmatprep.subr.mxu0 0.0
        %609 = vmatpush1.msra.mxu0 %v585
        %610 = vmatprep.subr.mxu0 0.0
        %611 = vmatpush1.msra.mxu0 0.0
        %612 = vmatprep.subr.mxu0 0.0
        %613 = vmatpush1.msra.mxu0 0.0
        %614 = vmatprep.subr.mxu0 0.0
        %615 = vmatpush1.msra.mxu0 0.0
        %616 = vmatprep.subr.mxu0 0.0
        %617 = vmatpush1.msra.mxu0 0.0
        %618 = vmatprep.subr.mxu0 0.0
        %619 = vmatpush1.msra.mxu0 0.0
        %620 = vmatprep.subr.mxu0 0.0
        %621 = vmatpush1.msra.mxu0 0.0
        %622 = vmatprep.subr.mxu0 0.0
        %623 = vmatpush1.msra.mxu0 0.0
        %624 = vmatprep.subr.mxu0 0.0
        %625 = vmatpush1.msra.mxu0 0.0
        %626 = vmatprep.subr.mxu0 0.0
        %627 = vmatpush1.msra.mxu0 0.0
        %628 = vmatprep.subr.mxu0 0.0
        %629 = vmatpush1.msra.mxu0 0.0
        %630 = vmatprep.subr.mxu0 0.0
        %631 = vmatpush1.msra.mxu0 0.0
        %632 = vmatprep.subr.mxu0 0.0
        %633 = vmatpush1.msra.mxu0 0.0
        %634 = vmatprep.subr.mxu0 0.0
        %635 = vmatpush1.msra.mxu0 0.0
        %636 = vmatprep.subr.mxu0 0.0
        %637 = vmatpush1.msra.mxu0 0.0
        %638 = vmatprep.subr.mxu0 0.0
        %639 = vmatpush1.msra.mxu0 0.0
        %640 = vmatprep.subr.mxu0 0.0
        %641 = vmatpush1.msra.mxu0 0.0
        %642 = vmatprep.subr.mxu0 0.0
        %643 = vmatpush1.msra.mxu0 0.0
        %644 = vmatprep.subr.mxu0 0.0
        %645 = vmatpush1.msra.mxu0 0.0
        %646 = vmatprep.subr.mxu0 0.0
        %647 = vmatpush1.msra.mxu0 0.0
        %648 = vmatprep.subr.mxu0 0.0
        %649 = vmatpush1.msra.mxu0 0.0
        %650 = vmatprep.subr.mxu0 0.0
        %651 = vmatpush1.msra.mxu0 0.0
        %652 = vmatprep.subr.mxu0 0.0
        %653 = vmatpush1.msra.mxu0 0.0
        %654 = vmatprep.subr.mxu0 0.0
        %655 = vmatpush1.msra.mxu0 0.0
        %656 = vmatprep.subr.mxu0 0.0
        %657 = vmatpush1.msra.mxu0 0.0
        %658 = vmatprep.mubr.f32.mxu0 0.0
        %659 = vmatmul.mubr.f32.gmra.mrb[0].mxu0 %v592
        %v660 = vpop.f32.mrb[0].mxu0
        %v661 = vadd.f32 %v590, %v660
        %v662 = vpop.f32.mrb[0].mxu0
        %663 = vdwg.mxu0
        %v664 = vmax.f32 %v661, 0.0
        %v665 = vld [vmem:[#allocation5 + $0x90] sm:$0xff]
        %v666 = vld [vmem:[#allocation5 + $0x98] sm:$0xff]
        %v667 = vld [vmem:[#allocation5 + $0xa0] sm:$0xff]
        %v668 = vld [vmem:[#allocation5 + $0xa8] sm:$0xff]
        %v669 = vld [vmem:[%s288] sm:$0xff]
        %v670 = vld [vmem:[#allocation5 + $0xb0] sm:$0xff]
        %vm671 = vcmask 64512
        %v673 = vsel %vm671, %v669, 0
        %675 = vmatprep.subr.mxu0 0.0
        %676 = vmatpush1.msra.mxu0 %v670
        %677 = vmatprep.subr.mxu0 0.0
        %678 = vmatpush1.msra.mxu0 0.0
        %679 = vmatprep.subr.mxu0 0.0
        %680 = vmatpush1.msra.mxu0 0.0
        %681 = vmatprep.subr.mxu0 0.0
        %682 = vmatpush1.msra.mxu0 0.0
        %683 = vmatprep.subr.mxu0 0.0
        %684 = vmatpush1.msra.mxu0 0.0
        %685 = vmatprep.subr.mxu0 0.0
        %686 = vmatpush1.msra.mxu0 0.0
        %687 = vmatprep.subr.mxu0 0.0
        %688 = vmatpush1.msra.mxu0 0.0
        %689 = vmatprep.subr.mxu0 0.0
        %690 = vmatpush1.msra.mxu0 0.0
        %691 = vmatprep.subr.mxu0 0.0
        %692 = vmatpush1.msra.mxu0 0.0
        %693 = vmatprep.subr.mxu0 0.0
        %694 = vmatpush1.msra.mxu0 0.0
        %695 = vmatprep.subr.mxu0 0.0
        %696 = vmatpush1.msra.mxu0 0.0
        %697 = vmatprep.subr.mxu0 0.0
        %698 = vmatpush1.msra.mxu0 0.0
        %699 = vmatprep.subr.mxu0 0.0
        %700 = vmatpush1.msra.mxu0 0.0
        %701 = vmatprep.subr.mxu0 0.0
        %702 = vmatpush1.msra.mxu0 0.0
        %703 = vmatprep.subr.mxu0 0.0
        %704 = vmatpush1.msra.mxu0 0.0
        %705 = vmatprep.subr.mxu0 0.0
        %706 = vmatpush1.msra.mxu0 0.0
        %707 = vmatprep.subr.mxu0 0.0
        %708 = vmatpush1.msra.mxu0 0.0
        %709 = vmatprep.subr.mxu0 0.0
        %710 = vmatpush1.msra.mxu0 0.0
        %711 = vmatprep.subr.mxu0 0.0
        %712 = vmatpush1.msra.mxu0 0.0
        %713 = vmatprep.subr.mxu0 0.0
        %714 = vmatpush1.msra.mxu0 0.0
        %715 = vmatprep.subr.mxu0 0.0
        %716 = vmatpush1.msra.mxu0 0.0
        %717 = vmatprep.subr.mxu0 0.0
        %718 = vmatpush1.msra.mxu0 0.0
        %719 = vmatprep.subr.mxu0 0.0
        %720 = vmatpush1.msra.mxu0 0.0
        %721 = vmatprep.subr.mxu0 0.0
        %722 = vmatpush1.msra.mxu0 0.0
        %723 = vmatprep.subr.mxu0 0.0
        %724 = vmatpush1.msra.mxu0 0.0
        %725 = vmatprep.subr.mxu0 0.0
        %726 = vmatpush1.msra.mxu0 0.0
        %727 = vmatprep.subr.mxu0 0.0
        %728 = vmatpush1.msra.mxu0 0.0
        %729 = vmatprep.subr.mxu0 0.0
        %730 = vmatpush1.msra.mxu0 0.0
        %731 = vmatprep.subr.mxu0 0.0
        %732 = vmatpush1.msra.mxu0 0.0
        %733 = vmatprep.subr.mxu0 0.0
        %734 = vmatpush1.msra.mxu0 0.0
        %735 = vmatprep.subr.mxu0 0.0
        %736 = vmatpush1.msra.mxu0 0.0
        %737 = vmatprep.subr.mxu0 0.0
        %738 = vmatpush1.msra.mxu0 0.0
        %739 = vmatprep.mubr.f32.mxu0 0.0
        %740 = vmatmul.mubr.f32.gmra.mrb[0].mxu0 %v673
        %v741 = vpop.f32.mrb[0].mxu0
        %v742 = vadd.f32 0.0, %v741
        %v743 = vpop.f32.mrb[0].mxu0
        %744 = vdwg.mxu0
        %v746 = vsel %vm381, %v664, 0
        %748 = vmatprep.subr.mxu0 0.0
        %749 = vmatpush1.msra.mxu0 %v665
        %750 = vmatprep.subr.mxu0 0.0
        %751 = vmatpush1.msra.mxu0 %v666
        %752 = vmatprep.subr.mxu0 0.0
        %753 = vmatpush1.msra.mxu0 %v667
        %754 = vmatprep.subr.mxu0 0.0
        %755 = vmatpush1.msra.mxu0 %v668
        %756 = vmatprep.subr.mxu0 0.0
        %757 = vmatpush1.msra.mxu0 0.0
        %758 = vmatprep.subr.mxu0 0.0
        %759 = vmatpush1.msra.mxu0 0.0
        %760 = vmatprep.subr.mxu0 0.0
        %761 = vmatpush1.msra.mxu0 0.0
        %762 = vmatprep.subr.mxu0 0.0
        %763 = vmatpush1.msra.mxu0 0.0
        %764 = vmatprep.subr.mxu0 0.0
        %765 = vmatpush1.msra.mxu0 0.0
        %766 = vmatprep.subr.mxu0 0.0
        %767 = vmatpush1.msra.mxu0 0.0
        %768 = vmatprep.subr.mxu0 0.0
        %769 = vmatpush1.msra.mxu0 0.0
        %770 = vmatprep.subr.mxu0 0.0
        %771 = vmatpush1.msra.mxu0 0.0
        %772 = vmatprep.subr.mxu0 0.0
        %773 = vmatpush1.msra.mxu0 0.0
        %774 = vmatprep.subr.mxu0 0.0
        %775 = vmatpush1.msra.mxu0 0.0
        %776 = vmatprep.subr.mxu0 0.0
        %777 = vmatpush1.msra.mxu0 0.0
        %778 = vmatprep.subr.mxu0 0.0
        %779 = vmatpush1.msra.mxu0 0.0
        %780 = vmatprep.subr.mxu0 0.0
        %781 = vmatpush1.msra.mxu0 0.0
        %782 = vmatprep.subr.mxu0 0.0
        %783 = vmatpush1.msra.mxu0 0.0
        %784 = vmatprep.subr.mxu0 0.0
        %785 = vmatpush1.msra.mxu0 0.0
        %786 = vmatprep.subr.mxu0 0.0
        %787 = vmatpush1.msra.mxu0 0.0
        %788 = vmatprep.subr.mxu0 0.0
        %789 = vmatpush1.msra.mxu0 0.0
        %790 = vmatprep.subr.mxu0 0.0
        %791 = vmatpush1.msra.mxu0 0.0
        %792 = vmatprep.subr.mxu0 0.0
        %793 = vmatpush1.msra.mxu0 0.0
        %794 = vmatprep.subr.mxu0 0.0
        %795 = vmatpush1.msra.mxu0 0.0
        %796 = vmatprep.subr.mxu0 0.0
        %797 = vmatpush1.msra.mxu0 0.0
        %798 = vmatprep.subr.mxu0 0.0
        %799 = vmatpush1.msra.mxu0 0.0
        %800 = vmatprep.subr.mxu0 0.0
        %801 = vmatpush1.msra.mxu0 0.0
        %802 = vmatprep.subr.mxu0 0.0
        %803 = vmatpush1.msra.mxu0 0.0
        %804 = vmatprep.subr.mxu0 0.0
        %805 = vmatpush1.msra.mxu0 0.0
        %806 = vmatprep.subr.mxu0 0.0
        %807 = vmatpush1.msra.mxu0 0.0
        %808 = vmatprep.subr.mxu0 0.0
        %809 = vmatpush1.msra.mxu0 0.0
        %810 = vmatprep.subr.mxu0 0.0
        %811 = vmatpush1.msra.mxu0 0.0
        %812 = vmatprep.mubr.f32.mxu0 0.0
        %813 = vmatmul.mubr.f32.gmra.mrb[0].mxu0 %v746
        %v814 = vpop.f32.mrb[0].mxu0
        %v815 = vadd.f32 %v742, %v814
        %v816 = vpop.f32.mrb[0].mxu0
        %817 = vdwg.mxu0
        %v818 = vld [vmem:[%s4 + $0x5] sm:$0x1]
        %v819 = vlaneseq
        %v820 = vshrl.u32 %v819, 7
        %v821 = vsub.s32 0, %v820
        %v822 = vrot.slane %v818, %v821
        %v823 = vadd.f32 %v815, %v822
        %v824 = vsel %vm297, %v823, 0.0
        %825 = vadd.xlane.f32.xlu0 %v824
        %v826 = vpop.xlane.xlu0 %825
        %v827 = vrcp.pop 16.0
        %v828 = vmul.f32 %v826, %v827
        %v829 = vsub.f32 %v823, %v828
        %v830 = vmul.f32 %v829, %v829
        %v831 = vsel %vm297, %v830, 0.0
        %832 = vadd.xlane.f32.xlu0 %v831
        %v833 = vpop.xlane.xlu0 %832
        %v834 = vmul.f32 %v833, %v827
        %v835 = vadd.f32 %v834, 1e-05
        %v836 = vrsqrt.pop %v835
        %v837 = vmul.f32 %v829, %v836
        %v838 = vld [vmem:[%s4 + $0x6] sm:$0x1]
        %v839 = vlaneseq
        %v840 = vshrl.u32 %v839, 7
        %v841 = vsub.s32 0, %v840
        %v842 = vrot.slane %v838, %v841
        %v843 = vmul.f32 %v837, %v842
        %v844 = vld [vmem:[%s4 + $0x7] sm:$0x1]
        %v845 = vlaneseq
        %v846 = vshrl.u32 %v845, 7
        %v847 = vsub.s32 0, %v846
        %v848 = vrot.slane %v844, %v847
        %v849 = vadd.f32 %v843, %v848
        %v850 = vmax.f32 %v849, 0.0
        %v851 = vld [vmem:[#allocation5 + $0xb8] sm:$0xff]
        %v852 = vld [vmem:[#allocation5 + $0xc0] sm:$0xff]
        %v853 = vld [vmem:[%s4 + $0x8] sm:$0x1]
        %v854 = vlaneseq
        %v855 = vshrl.u32 %v854, 7
        %v856 = vsub.s32 0, %v855
        %v857 = vrot.slane %v853, %v856
        %v859 = vsel %vm297, %v850, 0
        %861 = vmatprep.subr.mxu0 0.0
        %862 = vmatpush1.msra.mxu0 %v851
        %863 = vmatprep.subr.mxu0 0.0
        %864 = vmatpush1.msra.mxu0 %v852
        %865 = vmatprep.subr.mxu0 0.0
        %866 = vmatpush1.msra.mxu0 0.0
        %867 = vmatprep.subr.mxu0 0.0
        %868 = vmatpush1.msra.mxu0 0.0
        %869 = vmatprep.subr.mxu0 0.0
        %870 = vmatpush1.msra.mxu0 0.0
        %871 = vmatprep.subr.mxu0 0.0
        %872 = vmatpush1.msra.mxu0 0.0
        %873 = vmatprep.subr.mxu0 0.0
        %874 = vmatpush1.msra.mxu0 0.0
        %875 = vmatprep.subr.mxu0 0.0
        %876 = vmatpush1.msra.mxu0 0.0
        %877 = vmatprep.subr.mxu0 0.0
        %878 = vmatpush1.msra.mxu0 0.0
        %879 = vmatprep.subr.mxu0 0.0
        %880 = vmatpush1.msra.mxu0 0.0
        %881 = vmatprep.subr.mxu0 0.0
        %882 = vmatpush1.msra.mxu0 0.0
        %883 = vmatprep.subr.mxu0 0.0
        %884 = vmatpush1.msra.mxu0 0.0
        %885 = vmatprep.subr.mxu0 0.0
        %886 = vmatpush1.msra.mxu0 0.0
        %887 = vmatprep.subr.mxu0 0.0
        %888 = vmatpush1.msra.mxu0 0.0
        %889 = vmatprep.subr.mxu0 0.0
        %890 = vmatpush1.msra.mxu0 0.0
        %891 = vmatprep.subr.mxu0 0.0
        %892 = vmatpush1.msra.mxu0 0.0
        %893 = vmatprep.subr.mxu0 0.0
        %894 = vmatpush1.msra.mxu0 0.0
        %895 = vmatprep.subr.mxu0 0.0
        %896 = vmatpush1.msra.mxu0 0.0
        %897 = vmatprep.subr.mxu0 0.0
        %898 = vmatpush1.msra.mxu0 0.0
        %899 = vmatprep.subr.mxu0 0.0
        %900 = vmatpush1.msra.mxu0 0.0
        %901 = vmatprep.subr.mxu0 0.0
        %902 = vmatpush1.msra.mxu0 0.0
        %903 = vmatprep.subr.mxu0 0.0
        %904 = vmatpush1.msra.mxu0 0.0
        %905 = vmatprep.subr.mxu0 0.0
        %906 = vmatpush1.msra.mxu0 0.0
        %907 = vmatprep.subr.mxu0 0.0
        %908 = vmatpush1.msra.mxu0 0.0
        %909 = vmatprep.subr.mxu0 0.0
        %910 = vmatpush1.msra.mxu0 0.0
        %911 = vmatprep.subr.mxu0 0.0
        %912 = vmatpush1.msra.mxu0 0.0
        %913 = vmatprep.subr.mxu0 0.0
        %914 = vmatpush1.msra.mxu0 0.0
        %915 = vmatprep.subr.mxu0 0.0
        %916 = vmatpush1.msra.mxu0 0.0
        %917 = vmatprep.subr.mxu0 0.0
        %918 = vmatpush1.msra.mxu0 0.0
        %919 = vmatprep.subr.mxu0 0.0
        %920 = vmatpush1.msra.mxu0 0.0
        %921 = vmatprep.subr.mxu0 0.0
        %922 = vmatpush1.msra.mxu0 0.0
        %923 = vmatprep.subr.mxu0 0.0
        %924 = vmatpush1.msra.mxu0 0.0
        %925 = vmatprep.mubr.f32.mxu0 0.0
        %926 = vmatmul.mubr.f32.gmra.mrb[0].mxu0 %v859
        %v927 = vpop.f32.mrb[0].mxu0
        %v928 = vadd.f32 %v857, %v927
        %v929 = vpop.f32.mrb[0].mxu0
        %930 = vdwg.mxu0
        %931 = vst [vmem:[%s280] sm:$0xff] %v928
        %s932 = sand.u32 %s151, 1
        %s933 = scalar_lea.sflag [#allocation4], %s932
        %s934 = sand.u32 %s151, 1
        %s935 = smul.addr %s934, 8
        %s936 = scalar_lea.vmem [#allocation7], %s935
        // Predicated region
        $region49: #{tpu_custom_call.1} parent=39 // pred_check
          %p937 = pneg %p161
        $region50: #{tpu_custom_call.1} parent=39 // pred_check_branch
          %939 = sbr.rel (%p937) target = $region52
        $region51: #{tpu_custom_call.1} parent=39 // pred_region
          %s941 = ssub.s32 128, 128
          %942 = vsyncadd %s933, %s941
          %s943 = smul.addr %s23, 128
          %s944 = scalar_lea.hbm %s5, %s943
          %s946 = sshll.u32 %s936, 4
          %s947 = int_to_ptr.vmem [resolvable:$true] %s946
          %949 = dma.vmem_to_hbm [thread:$0]  %s947, 128, %s944, %s933
        $region52: #{tpu_custom_call.1} parent=39 // pred_fallthru
          _
      $region40: #{tpu_custom_call.1} parent=5 // pred_fallthru
        _
      %p950 = scmp.le.s32.totalorder 2, %s18
      // Predicated region
      $region53: #{tpu_custom_call.1} parent=5 // pred_check
        %p951 = pneg %p950
      $region54: #{tpu_custom_call.1} parent=5 // pred_check_branch
        %953 = sbr.rel (%p951) target = $region56
      $region55: #{tpu_custom_call.1} parent=5 // pred_region
        %s954 = ssub.s32 %s18, 2
        // Predicated region
        $region57: #{tpu_custom_call.1} parent=55 // pred_check
          %p955 = pneg %p167
        $region58: #{tpu_custom_call.1} parent=55 // pred_check_branch
          %957 = sbr.rel (%p955) target = $region60
        $region59: #{tpu_custom_call.1} parent=55 // pred_region
          %s958 = sand.u32 %s152, 1
          %s959 = scalar_lea.sflag [#allocation4], %s958
          %s960 = sand.u32 %s152, 1
          %s961 = smul.addr %s960, 8
          %s962 = scalar_lea.vmem [#allocation7], %s961
          %963 = dma.done %s959, 128
        $region60: #{tpu_custom_call.1} parent=55 // pred_fallthru
          _
      $region56: #{tpu_custom_call.1} parent=5 // pred_fallthru
        _
    $region6: #{tpu_custom_call.1} parent=1 // loop_footer
      %s22 = sadd.s32 1, %s18
    $region7: #{tpu_custom_call.1} parent=1 // loop_footer_branch
      %17 = sbr.rel target = $region3
    $region8: #{tpu_custom_call.1} parent=1 // loop_exit
      _
    %964 = vsyncpa [#allocation3], 1
    %s965 = scalar_lea.sflag [#allocation3], 1
    %966 = vsyncpa %s965, 1
    %967 = vsyncpa [#allocation6], 1
    %968 = vsyncpa [#allocation4], 1
    %s969 = scalar_lea.sflag [#allocation4], 1
    %970 = vsyncpa %s969, 1

</llo_original>
